<compile_context>
chip_gen: v7x
topology: tpu7x:2x2x1
jax: 0.10.0
libtpu: 0.0.40
codegen_flags: <defaults>
</compile_context>

<pallas_src>
import functools

import jax
import jax.numpy as jnp
import numpy as np
from jax.experimental import pallas as pl
from jax.experimental.pallas import tpu as pltpu

LANE = 128


def _round_up(x, m):
    return (x + m - 1) // m * m


def _chip_config():
    """Returns (tensorcores_per_device, row_budget).

    row_budget = max number of 128-lane rows (summed over the batch block) a
    single grid step may stream: 13 maps * rows * 128 lanes * 4 B, double
    buffered, stays inside the default scoped-VMEM limit on every chip.
    """
    try:
        kind = jax.devices()[0].device_kind.lower()
    except Exception:
        kind = ""
    if "v7" in kind:
        return 2, 1024          # 2 TCs / chip, faster HBM, 32 MiB scoped VMEM
    if "v4" in kind:
        return 2, 512           # megacore: 2 TCs behind one device
    return 1, 512               # v5e / v6e: single TensorCore


def _loss_reduce_kernel(gt_s_ref, pr_s_ref, ig_ref, gt_g_ref, pr_g_ref,
                        acc_ref):
    """acc_ref block (1, 6, 8, 128) f32, resident across (batch-block, tile):
       [0] sum(gt_score)
       [1] sum(gt_score * pred_score_masked)
       [2] sum(gt_score^2)
       [3] sum(pred_score_masked^2)
       [4] sum(angle_loss_map * gt_score)
       [5] sum(iou_loss_map   * gt_score)
    """
    bi = pl.program_id(1)
    j = pl.program_id(2)

    @pl.when((bi == 0) & (j == 0))
    def _init():
        acc_ref[...] = jnp.zeros_like(acc_ref)

    bb, tp, lane = gt_s_ref.shape

    def psum(x):
        # (BB,tp,128) -> (BB*tp/8, 8, 128): tile-aligned reshape + leading-axis
        # VPU adds; the single cross-lane/sublane reduction is deferred to JAX.
        return jnp.sum(x.reshape(bb * tp // 8, 8, lane), axis=0)

    gt = gt_s_ref[...].astype(jnp.float32)
    # Mask in the input dtype (matches the PyTorch op order), then cast.
    pr = (pr_s_ref[...] * (1 - ig_ref[...])).astype(jnp.float32)

    d1_gt = gt_g_ref[:, 0].astype(jnp.float32)
    d2_gt = gt_g_ref[:, 1].astype(jnp.float32)
    d3_gt = gt_g_ref[:, 2].astype(jnp.float32)
    d4_gt = gt_g_ref[:, 3].astype(jnp.float32)
    ang_gt = gt_g_ref[:, 4].astype(jnp.float32)
    d1_pr = pr_g_ref[:, 0].astype(jnp.float32)
    d2_pr = pr_g_ref[:, 1].astype(jnp.float32)
    d3_pr = pr_g_ref[:, 2].astype(jnp.float32)
    d4_pr = pr_g_ref[:, 3].astype(jnp.float32)
    ang_pr = pr_g_ref[:, 4].astype(jnp.float32)

    area_gt = (d1_gt + d2_gt) * (d3_gt + d4_gt)
    area_pr = (d1_pr + d2_pr) * (d3_pr + d4_pr)
    w_union = jnp.minimum(d3_gt, d3_pr) + jnp.minimum(d4_gt, d4_pr)
    h_union = jnp.minimum(d1_gt, d1_pr) + jnp.minimum(d2_gt, d2_pr)
    area_int = w_union * h_union
    area_union = area_gt + area_pr - area_int

    iou_loss_map = -jnp.log((area_int + 1.0) / (area_union + 1.0))
    angle_loss_map = 1.0 - jnp.cos(ang_pr - ang_gt)

    acc_ref[0, 0] += psum(gt)
    acc_ref[0, 1] += psum(gt * pr)
    acc_ref[0, 2] += psum(gt * gt)
    acc_ref[0, 3] += psum(pr * pr)
    acc_ref[0, 4] += psum(angle_loss_map * gt)
    acc_ref[0, 5] += psum(iou_loss_map * gt)


@functools.partial(jax.jit, static_argnames=("weight_angle",))
def east_loss(gt_score, pred_score, gt_geo, pred_geo, ignored_map,
              weight_angle=10.0):
    """Inputs follow the PyTorch module: NCHW, score/ignored C=1, geo C=5."""
    b, _, h, w = gt_score.shape
    n = h * w
    p0 = pl.cdiv(n, LANE)                       # 128-lane rows per map per batch

    ncores, row_budget = _chip_config()

    # Tile COUNT first (multiple of ncores), then tp; p_pad is within 8 rows
    # per tile of p0, so the wrapper pad (if any) is tiny and usually zero.
    tiles = ncores * max(1, pl.cdiv(p0, ncores * row_budget))
    tp = _round_up(pl.cdiv(p0, tiles), 8)
    p_pad = tiles * tp
    pad = p_pad * LANE - n                      # zero pad contributes 0 to sums
    tiles_per_core = tiles // ncores

    # Batch block: amortize fixed per-step overhead; keep per-step DMA ~2-4 MiB.
    max_bb = max(1, row_budget // tp)
    bb = 1
    for cand in range(min(b, max_bb), 0, -1):
        if b % cand == 0:
            bb = cand
            break

    def prep_score(x):
        f = x.reshape(b, n)                     # free reshape, native dtype
        if pad:
            f = jnp.pad(f, ((0, 0), (0, pad)))
        return f.reshape(b, p_pad, LANE)

    def prep_geo(x):
        f = x.reshape(b, 5, n)                  # free reshape, no transpose
        if pad:
            f = jnp.pad(f, ((0, 0), (0, 0), (0, pad)))
        return f.reshape(b, 5, p_pad, LANE)

    gt_s = prep_score(gt_score)
    pr_s = prep_score(pred_score)
    ig_s = prep_score(ignored_map)
    gt_g = prep_geo(gt_geo)
    pr_g = prep_geo(pred_geo)

    score_spec = pl.BlockSpec(
        (bb, tp, LANE), lambda c, bi, j: (bi, c * tiles_per_core + j, 0))
    geo_spec = pl.BlockSpec(
        (bb, 5, tp, LANE), lambda c, bi, j: (bi, 0, c * tiles_per_core + j, 0))

    itemsize = jnp.dtype(gt_score.dtype).itemsize
    cost = pl.CostEstimate(
        flops=30 * b * n,
        transcendentals=2 * b * n,
        bytes_accessed=13 * b * n * itemsize + ncores * 6 * 8 * LANE * 4,
    )

    # TODO(synk): on v7x, verify in xprof that the leading "parallel" axis
    # actually shards across the 2 TensorCores; if not, switch it to
    # pltpu.CORE_PARALLEL.
    partials = pl.pallas_call(
        _loss_reduce_kernel,
        out_shape=jax.ShapeDtypeStruct((ncores, 6, 8, LANE), jnp.float32),
        grid_spec=pltpu.PrefetchScalarGridSpec(
            num_scalar_prefetch=0,
            grid=(ncores, b // bb, tiles_per_core),
            in_specs=[score_spec, score_spec, score_spec, geo_spec, geo_spec],
            out_specs=pl.BlockSpec((1, 6, 8, LANE),
                                   lambda c, bi, j: (c, 0, 0, 0)),
        ),
        compiler_params=pltpu.CompilerParams(
            dimension_semantics=("parallel", "arbitrary", "arbitrary")),
        cost_estimate=cost,
    )(gt_s, pr_s, ig_s, gt_g, pr_g)

    sums = jnp.sum(partials, axis=(0, 2, 3))    # (6,) final reduction in JAX
    sum_gt, inter, sq_gt, sq_pr, s_angle, s_iou = (sums[k] for k in range(6))

    classify_loss = 1.0 - 2.0 * inter / (sq_gt + sq_pr + 1e-05)
    safe_gt = jnp.maximum(sum_gt, 1.0)          # avoid 0/0 in masked branch
    angle_loss = s_angle / safe_gt
    iou_loss = s_iou / safe_gt
    geo_loss = weight_angle * angle_loss + iou_loss
    total = geo_loss + classify_loss

    # Early-return branch of the PyTorch module: sum(pred_score+pred_geo)*0 == 0
    # TODO(synk): the original module's print() side effects are not reproduced.
    return jnp.where(sum_gt < 1.0, jnp.float32(0.0), total)


def _reference_loss(gt_score, pred_score, gt_geo, pred_geo, ignored_map,
                    weight_angle=10.0):
    # Pure-JAX reference mirroring the PyTorch forward (main branch).
    gt_score = gt_score.astype(jnp.float32)
    pred_score = (pred_score * (1.0 - ignored_map)).astype(jnp.float32)
    inter = jnp.sum(gt_score * pred_score)
    union = jnp.sum(gt_score * gt_score) + jnp.sum(pred_score * pred_score) + 1e-05
    classify = 1.0 - 2.0 * inter / union

    d1g, d2g, d3g, d4g, ag = jnp.split(gt_geo.astype(jnp.float32), 5, axis=1)
    d1p, d2p, d3p, d4p, ap = jnp.split(pred_geo.astype(jnp.float32), 5, axis=1)
    area_gt = (d1g + d2g) * (d3g + d4g)
    area_pr = (d1p + d2p) * (d3p + d4p)
    w_union = jnp.minimum(d3g, d3p) + jnp.minimum(d4g, d4p)
    h_union = jnp.minimum(d1g, d1p) + jnp.minimum(d2g, d2p)
    area_int = w_union * h_union
    area_union = area_gt + area_pr - area_int
    iou_map = -jnp.log((area_int + 1.0) / (area_union + 1.0))
    ang_map = 1.0 - jnp.cos(ap - ag)
    s_gt = jnp.sum(gt_score)
    angle_loss = jnp.sum(ang_map * gt_score) / s_gt
    iou_loss = jnp.sum(iou_map * gt_score) / s_gt
    return weight_angle * angle_loss + iou_loss + classify


if __name__ == "__main__":
    key = jax.random.PRNGKey(0)
    k1, k2, k3, k4, k5 = jax.random.split(key, 5)

    B, H, W = 2, 16, 16
    gt_score = (jax.random.uniform(k1, (B, 1, H, W)) > 0.5).astype(jnp.float32)
    pred_score = jax.random.uniform(k2, (B, 1, H, W), dtype=jnp.float32)
    gt_geo = jax.random.uniform(k3, (B, 5, H, W), dtype=jnp.float32) * 8.0
    pred_geo = jax.random.uniform(k4, (B, 5, H, W), dtype=jnp.float32) * 8.0
    ignored_map = (jax.random.uniform(k5, (B, 1, H, W)) > 0.9).astype(jnp.float32)

    out = jax.block_until_ready(
        east_loss(gt_score, pred_score, gt_geo, pred_geo, ignored_map))
    ref = _reference_loss(gt_score, pred_score, gt_geo, pred_geo, ignored_map)
    np.testing.assert_allclose(np.asarray(out), np.asarray(ref),
                               rtol=1e-4, atol=1e-4)

    # Second case exercising the tiny tail-pad path (H*W not a multiple of 1024)
    B2, H2, W2 = 3, 24, 20
    k6, k7, k8, k9, k10 = jax.random.split(jax.random.PRNGKey(1), 5)
    gt_score2 = (jax.random.uniform(k6, (B2, 1, H2, W2)) > 0.5).astype(jnp.float32)
    pred_score2 = jax.random.uniform(k7, (B2, 1, H2, W2), dtype=jnp.float32)
    gt_geo2 = jax.random.uniform(k8, (B2, 5, H2, W2), dtype=jnp.float32) * 8.0
    pred_geo2 = jax.random.uniform(k9, (B2, 5, H2, W2), dtype=jnp.float32) * 8.0
    ignored2 = (jax.random.uniform(k10, (B2, 1, H2, W2)) > 0.9).astype(jnp.float32)
    out2 = jax.block_until_ready(
        east_loss(gt_score2, pred_score2, gt_geo2, pred_geo2, ignored2))
    ref2 = _reference_loss(gt_score2, pred_score2, gt_geo2, pred_geo2, ignored2)
    np.testing.assert_allclose(np.asarray(out2), np.asarray(ref2),
                               rtol=1e-4, atol=1e-4)

    print("KERNEL_OK")
</pallas_src>

<mosaic_0001>
module attributes {stable_mosaic.version = 11 : i64} {
  func.func @_loss_reduce_kernel(%arg0: i32, %arg1: i32, %arg2: i32, %arg3: memref<2x8x128xf32, #tpu.memory_space<vmem>>, %arg4: memref<2x8x128xf32, #tpu.memory_space<vmem>>, %arg5: memref<2x8x128xf32, #tpu.memory_space<vmem>>, %arg6: memref<2x5x8x128xf32, #tpu.memory_space<vmem>>, %arg7: memref<2x5x8x128xf32, #tpu.memory_space<vmem>>, %arg8: memref<1x6x8x128xf32, #tpu.memory_space<vmem>>) attributes {dimension_semantics = [#tpu.dimension_semantics<parallel>, #tpu.dimension_semantics<arbitrary>, #tpu.dimension_semantics<arbitrary>], iteration_bounds = array<i64: 1, 1, 1>, scalar_prefetch = 0 : i64, scratch_operands = 0 : i64, tpu.core_type = #tpu.core_type<tc>, window_params = [{transform_indices = @transform_0, window_bounds = array<i64: 2, 8, 128>}, {transform_indices = @transform_1, window_bounds = array<i64: 2, 8, 128>}, {transform_indices = @transform_2, window_bounds = array<i64: 2, 8, 128>}, {transform_indices = @transform_3, window_bounds = array<i64: 2, 5, 8, 128>}, {transform_indices = @transform_4, window_bounds = array<i64: 2, 5, 8, 128>}, {transform_indices = @transform_5, window_bounds = array<i64: 1, 6, 8, 128>}]} {
    %c0_i32 = arith.constant 0 : i32
    %0 = arith.cmpi eq, %arg1, %c0_i32 : i32
    %c0_i32_0 = arith.constant 0 : i32
    %1 = arith.cmpi eq, %arg2, %c0_i32_0 : i32
    %2 = arith.andi %0, %1 : i1
    %3 = arith.extui %2 : i1 to i32
    %c0_i32_1 = arith.constant 0 : i32
    %4 = arith.cmpi ne, %3, %c0_i32_1 : i32
    scf.if %4 {
      %cst_103 = arith.constant 0.000000e+00 : f32
      %105 = vector.broadcast %cst_103 : f32 to vector<1x6x8x128xf32>
      %c0_104 = arith.constant 0 : index
      %c0_105 = arith.constant 0 : index
      %c0_106 = arith.constant 0 : index
      %c0_107 = arith.constant 0 : index
      %106 = vector.load %arg8[%c0_104, %c0_105, %c0_106, %c0_107] : memref<1x6x8x128xf32, #tpu.memory_space<vmem>>, vector<1x6x8x128xf32>
      tpu.vector_store %arg8[%c0_104, %c0_105, %c0_106, %c0_107], %105 {strides = array<i32>} : memref<1x6x8x128xf32, #tpu.memory_space<vmem>>, vector<1x6x8x128xf32>,
    } else {
    }
    %c0 = arith.constant 0 : index
    %c0_2 = arith.constant 0 : index
    %c0_3 = arith.constant 0 : index
    %5 = vector.load %arg3[%c0, %c0_2, %c0_3] : memref<2x8x128xf32, #tpu.memory_space<vmem>>, vector<2x8x128xf32>
    %c0_4 = arith.constant 0 : index
    %c0_5 = arith.constant 0 : index
    %c0_6 = arith.constant 0 : index
    %6 = vector.load %arg4[%c0_4, %c0_5, %c0_6] : memref<2x8x128xf32, #tpu.memory_space<vmem>>, vector<2x8x128xf32>
    %c0_7 = arith.constant 0 : index
    %c0_8 = arith.constant 0 : index
    %c0_9 = arith.constant 0 : index
    %7 = vector.load %arg5[%c0_7, %c0_8, %c0_9] : memref<2x8x128xf32, #tpu.memory_space<vmem>>, vector<2x8x128xf32>
    %cst = arith.constant 1.000000e+00 : f32
    %8 = vector.broadcast %cst : f32 to vector<2x8x128xf32>
    %9 = arith.subf %8, %7 : vector<2x8x128xf32>
    %10 = arith.mulf %6, %9 : vector<2x8x128xf32>
    %c0_10 = arith.constant 0 : index
    %c0_11 = arith.constant 0 : index
    %c0_12 = arith.constant 0 : index
    %c0_13 = arith.constant 0 : index
    %11 = vector.load %arg6[%c0_10, %c0_11, %c0_12, %c0_13] : memref<2x5x8x128xf32, #tpu.memory_space<vmem>>, vector<2x1x8x128xf32>
    %12 = vector.shape_cast %11 : vector<2x1x8x128xf32> to vector<2x8x128xf32>
    %c0_14 = arith.constant 0 : index
    %c1 = arith.constant 1 : index
    %c0_15 = arith.constant 0 : index
    %c0_16 = arith.constant 0 : index
    %13 = vector.load %arg6[%c0_14, %c1, %c0_15, %c0_16] : memref<2x5x8x128xf32, #tpu.memory_space<vmem>>, vector<2x1x8x128xf32>
    %14 = vector.shape_cast %13 : vector<2x1x8x128xf32> to vector<2x8x128xf32>
    %c0_17 = arith.constant 0 : index
    %c2 = arith.constant 2 : index
    %c0_18 = arith.constant 0 : index
    %c0_19 = arith.constant 0 : index
    %15 = vector.load %arg6[%c0_17, %c2, %c0_18, %c0_19] : memref<2x5x8x128xf32, #tpu.memory_space<vmem>>, vector<2x1x8x128xf32>
    %16 = vector.shape_cast %15 : vector<2x1x8x128xf32> to vector<2x8x128xf32>
    %c0_20 = arith.constant 0 : index
    %c3 = arith.constant 3 : index
    %c0_21 = arith.constant 0 : index
    %c0_22 = arith.constant 0 : index
    %17 = vector.load %arg6[%c0_20, %c3, %c0_21, %c0_22] : memref<2x5x8x128xf32, #tpu.memory_space<vmem>>, vector<2x1x8x128xf32>
    %18 = vector.shape_cast %17 : vector<2x1x8x128xf32> to vector<2x8x128xf32>
    %c0_23 = arith.constant 0 : index
    %c4 = arith.constant 4 : index
    %c0_24 = arith.constant 0 : index
    %c0_25 = arith.constant 0 : index
    %19 = vector.load %arg6[%c0_23, %c4, %c0_24, %c0_25] : memref<2x5x8x128xf32, #tpu.memory_space<vmem>>, vector<2x1x8x128xf32>
    %20 = vector.shape_cast %19 : vector<2x1x8x128xf32> to vector<2x8x128xf32>
    %c0_26 = arith.constant 0 : index
    %c0_27 = arith.constant 0 : index
    %c0_28 = arith.constant 0 : index
    %c0_29 = arith.constant 0 : index
    %21 = vector.load %arg7[%c0_26, %c0_27, %c0_28, %c0_29] : memref<2x5x8x128xf32, #tpu.memory_space<vmem>>, vector<2x1x8x128xf32>
    %22 = vector.shape_cast %21 : vector<2x1x8x128xf32> to vector<2x8x128xf32>
    %c0_30 = arith.constant 0 : index
    %c1_31 = arith.constant 1 : index
    %c0_32 = arith.constant 0 : index
    %c0_33 = arith.constant 0 : index
    %23 = vector.load %arg7[%c0_30, %c1_31, %c0_32, %c0_33] : memref<2x5x8x128xf32, #tpu.memory_space<vmem>>, vector<2x1x8x128xf32>
    %24 = vector.shape_cast %23 : vector<2x1x8x128xf32> to vector<2x8x128xf32>
    %c0_34 = arith.constant 0 : index
    %c2_35 = arith.constant 2 : index
    %c0_36 = arith.constant 0 : index
    %c0_37 = arith.constant 0 : index
    %25 = vector.load %arg7[%c0_34, %c2_35, %c0_36, %c0_37] : memref<2x5x8x128xf32, #tpu.memory_space<vmem>>, vector<2x1x8x128xf32>
    %26 = vector.shape_cast %25 : vector<2x1x8x128xf32> to vector<2x8x128xf32>
    %c0_38 = arith.constant 0 : index
    %c3_39 = arith.constant 3 : index
    %c0_40 = arith.constant 0 : index
    %c0_41 = arith.constant 0 : index
    %27 = vector.load %arg7[%c0_38, %c3_39, %c0_40, %c0_41] : memref<2x5x8x128xf32, #tpu.memory_space<vmem>>, vector<2x1x8x128xf32>
    %28 = vector.shape_cast %27 : vector<2x1x8x128xf32> to vector<2x8x128xf32>
    %c0_42 = arith.constant 0 : index
    %c4_43 = arith.constant 4 : index
    %c0_44 = arith.constant 0 : index
    %c0_45 = arith.constant 0 : index
    %29 = vector.load %arg7[%c0_42, %c4_43, %c0_44, %c0_45] : memref<2x5x8x128xf32, #tpu.memory_space<vmem>>, vector<2x1x8x128xf32>
    %30 = vector.shape_cast %29 : vector<2x1x8x128xf32> to vector<2x8x128xf32>
    %31 = arith.addf %12, %14 : vector<2x8x128xf32>
    %32 = arith.addf %16, %18 : vector<2x8x128xf32>
    %33 = arith.mulf %31, %32 : vector<2x8x128xf32>
    %34 = arith.addf %22, %24 : vector<2x8x128xf32>
    %35 = arith.addf %26, %28 : vector<2x8x128xf32>
    %36 = arith.mulf %34, %35 : vector<2x8x128xf32>
    %37 = arith.minimumf %16, %26 : vector<2x8x128xf32>
    %38 = arith.minimumf %18, %28 : vector<2x8x128xf32>
    %39 = arith.addf %37, %38 : vector<2x8x128xf32>
    %40 = arith.minimumf %12, %22 : vector<2x8x128xf32>
    %41 = arith.minimumf %14, %24 : vector<2x8x128xf32>
    %42 = arith.addf %40, %41 : vector<2x8x128xf32>
    %43 = arith.mulf %39, %42 : vector<2x8x128xf32>
    %44 = arith.addf %33, %36 : vector<2x8x128xf32>
    %45 = arith.subf %44, %43 : vector<2x8x128xf32>
    %cst_46 = arith.constant 1.000000e+00 : f32
    %46 = vector.broadcast %cst_46 : f32 to vector<2x8x128xf32>
    %47 = arith.addf %43, %46 : vector<2x8x128xf32>
    %cst_47 = arith.constant 1.000000e+00 : f32
    %48 = vector.broadcast %cst_47 : f32 to vector<2x8x128xf32>
    %49 = arith.addf %45, %48 : vector<2x8x128xf32>
    %50 = arith.divf %47, %49 : vector<2x8x128xf32>
    %51 = math.log %50 : vector<2x8x128xf32>
    %cst_48 = arith.constant 0.000000e+00 : f32
    %52 = vector.broadcast %cst_48 : f32 to vector<2x8x128xf32>
    %53 = arith.subf %52, %51 : vector<2x8x128xf32>
    %54 = arith.subf %30, %20 : vector<2x8x128xf32>
    %55 = math.cos %54 : vector<2x8x128xf32>
    %cst_49 = arith.constant 1.000000e+00 : f32
    %56 = vector.broadcast %cst_49 : f32 to vector<2x8x128xf32>
    %57 = arith.subf %56, %55 : vector<2x8x128xf32>
    %c0_50 = arith.constant 0 : index
    %c0_51 = arith.constant 0 : index
    %c0_52 = arith.constant 0 : index
    %c0_53 = arith.constant 0 : index
    %58 = vector.load %arg8[%c0_50, %c0_51, %c0_52, %c0_53] : memref<1x6x8x128xf32, #tpu.memory_space<vmem>>, vector<1x1x8x128xf32>
    %59 = vector.shape_cast %58 : vector<1x1x8x128xf32> to vector<8x128xf32>
    %cst_54 = arith.constant dense<0.000000e+00> : vector<8x128xf32>
    %60 = vector.multi_reduction <add>, %5, %cst_54 [0] : vector<2x8x128xf32> to vector<8x128xf32>
    %61 = arith.addf %59, %60 : vector<8x128xf32>
    %c0_55 = arith.constant 0 : index
    %c0_56 = arith.constant 0 : index
    %c0_57 = arith.constant 0 : index
    %c0_58 = arith.constant 0 : index
    %62 = vector.load %arg8[%c0_55, %c0_56, %c0_57, %c0_58] : memref<1x6x8x128xf32, #tpu.memory_space<vmem>>, vector<1x1x8x128xf32>
    %63 = vector.shape_cast %62 : vector<1x1x8x128xf32> to vector<8x128xf32>
    %64 = vector.shape_cast %61 : vector<8x128xf32> to vector<1x1x8x128xf32>
    tpu.vector_store %arg8[%c0_55, %c0_56, %c0_57, %c0_58], %64 {strides = array<i32>} : memref<1x6x8x128xf32, #tpu.memory_space<vmem>>, vector<1x1x8x128xf32>,
    %c0_59 = arith.constant 0 : index
    %c1_60 = arith.constant 1 : index
    %c0_61 = arith.constant 0 : index
    %c0_62 = arith.constant 0 : index
    %65 = vector.load %arg8[%c0_59, %c1_60, %c0_61, %c0_62] : memref<1x6x8x128xf32, #tpu.memory_space<vmem>>, vector<1x1x8x128xf32>
    %66 = vector.shape_cast %65 : vector<1x1x8x128xf32> to vector<8x128xf32>
    %67 = arith.mulf %5, %10 : vector<2x8x128xf32>
    %cst_63 = arith.constant dense<0.000000e+00> : vector<8x128xf32>
    %68 = vector.multi_reduction <add>, %67, %cst_63 [0] : vector<2x8x128xf32> to vector<8x128xf32>
    %69 = arith.addf %66, %68 : vector<8x128xf32>
    %c0_64 = arith.constant 0 : index
    %c1_65 = arith.constant 1 : index
    %c0_66 = arith.constant 0 : index
    %c0_67 = arith.constant 0 : index
    %70 = vector.load %arg8[%c0_64, %c1_65, %c0_66, %c0_67] : memref<1x6x8x128xf32, #tpu.memory_space<vmem>>, vector<1x1x8x128xf32>
    %71 = vector.shape_cast %70 : vector<1x1x8x128xf32> to vector<8x128xf32>
    %72 = vector.shape_cast %69 : vector<8x128xf32> to vector<1x1x8x128xf32>
    tpu.vector_store %arg8[%c0_64, %c1_65, %c0_66, %c0_67], %72 {strides = array<i32>} : memref<1x6x8x128xf32, #tpu.memory_space<vmem>>, vector<1x1x8x128xf32>,
    %c0_68 = arith.constant 0 : index
    %c2_69 = arith.constant 2 : index
    %c0_70 = arith.constant 0 : index
    %c0_71 = arith.constant 0 : index
    %73 = vector.load %arg8[%c0_68, %c2_69, %c0_70, %c0_71] : memref<1x6x8x128xf32, #tpu.memory_space<vmem>>, vector<1x1x8x128xf32>
    %74 = vector.shape_cast %73 : vector<1x1x8x128xf32> to vector<8x128xf32>
    %75 = arith.mulf %5, %5 : vector<2x8x128xf32>
    %cst_72 = arith.constant dense<0.000000e+00> : vector<8x128xf32>
    %76 = vector.multi_reduction <add>, %75, %cst_72 [0] : vector<2x8x128xf32> to vector<8x128xf32>
    %77 = arith.addf %74, %76 : vector<8x128xf32>
    %c0_73 = arith.constant 0 : index
    %c2_74 = arith.constant 2 : index
    %c0_75 = arith.constant 0 : index
    %c0_76 = arith.constant 0 : index
    %78 = vector.load %arg8[%c0_73, %c2_74, %c0_75, %c0_76] : memref<1x6x8x128xf32, #tpu.memory_space<vmem>>, vector<1x1x8x128xf32>
    %79 = vector.shape_cast %78 : vector<1x1x8x128xf32> to vector<8x128xf32>
    %80 = vector.shape_cast %77 : vector<8x128xf32> to vector<1x1x8x128xf32>
    tpu.vector_store %arg8[%c0_73, %c2_74, %c0_75, %c0_76], %80 {strides = array<i32>} : memref<1x6x8x128xf32, #tpu.memory_space<vmem>>, vector<1x1x8x128xf32>,
    %c0_77 = arith.constant 0 : index
    %c3_78 = arith.constant 3 : index
    %c0_79 = arith.constant 0 : index
    %c0_80 = arith.constant 0 : index
    %81 = vector.load %arg8[%c0_77, %c3_78, %c0_79, %c0_80] : memref<1x6x8x128xf32, #tpu.memory_space<vmem>>, vector<1x1x8x128xf32>
    %82 = vector.shape_cast %81 : vector<1x1x8x128xf32> to vector<8x128xf32>
    %83 = arith.mulf %10, %10 : vector<2x8x128xf32>
    %cst_81 = arith.constant dense<0.000000e+00> : vector<8x128xf32>
    %84 = vector.multi_reduction <add>, %83, %cst_81 [0] : vector<2x8x128xf32> to vector<8x128xf32>
    %85 = arith.addf %82, %84 : vector<8x128xf32>
    %c0_82 = arith.constant 0 : index
    %c3_83 = arith.constant 3 : index
    %c0_84 = arith.constant 0 : index
    %c0_85 = arith.constant 0 : index
    %86 = vector.load %arg8[%c0_82, %c3_83, %c0_84, %c0_85] : memref<1x6x8x128xf32, #tpu.memory_space<vmem>>, vector<1x1x8x128xf32>
    %87 = vector.shape_cast %86 : vector<1x1x8x128xf32> to vector<8x128xf32>
    %88 = vector.shape_cast %85 : vector<8x128xf32> to vector<1x1x8x128xf32>
    tpu.vector_store %arg8[%c0_82, %c3_83, %c0_84, %c0_85], %88 {strides = array<i32>} : memref<1x6x8x128xf32, #tpu.memory_space<vmem>>, vector<1x1x8x128xf32>,
    %c0_86 = arith.constant 0 : index
    %c4_87 = arith.constant 4 : index
    %c0_88 = arith.constant 0 : index
    %c0_89 = arith.constant 0 : index
    %89 = vector.load %arg8[%c0_86, %c4_87, %c0_88, %c0_89] : memref<1x6x8x128xf32, #tpu.memory_space<vmem>>, vector<1x1x8x128xf32>
    %90 = vector.shape_cast %89 : vector<1x1x8x128xf32> to vector<8x128xf32>
    %91 = arith.mulf %57, %5 : vector<2x8x128xf32>
    %cst_90 = arith.constant dense<0.000000e+00> : vector<8x128xf32>
    %92 = vector.multi_reduction <add>, %91, %cst_90 [0] : vector<2x8x128xf32> to vector<8x128xf32>
    %93 = arith.addf %90, %92 : vector<8x128xf32>
    %c0_91 = arith.constant 0 : index
    %c4_92 = arith.constant 4 : index
    %c0_93 = arith.constant 0 : index
    %c0_94 = arith.constant 0 : index
    %94 = vector.load %arg8[%c0_91, %c4_92, %c0_93, %c0_94] : memref<1x6x8x128xf32, #tpu.memory_space<vmem>>, vector<1x1x8x128xf32>
    %95 = vector.shape_cast %94 : vector<1x1x8x128xf32> to vector<8x128xf32>
    %96 = vector.shape_cast %93 : vector<8x128xf32> to vector<1x1x8x128xf32>
    tpu.vector_store %arg8[%c0_91, %c4_92, %c0_93, %c0_94], %96 {strides = array<i32>} : memref<1x6x8x128xf32, #tpu.memory_space<vmem>>, vector<1x1x8x128xf32>,
    %c0_95 = arith.constant 0 : index
    %c5 = arith.constant 5 : index
    %c0_96 = arith.constant 0 : index
    %c0_97 = arith.constant 0 : index
    %97 = vector.load %arg8[%c0_95, %c5, %c0_96, %c0_97] : memref<1x6x8x128xf32, #tpu.memory_space<vmem>>, vector<1x1x8x128xf32>
    %98 = vector.shape_cast %97 : vector<1x1x8x128xf32> to vector<8x128xf32>
    %99 = arith.mulf %53, %5 : vector<2x8x128xf32>
    %cst_98 = arith.constant dense<0.000000e+00> : vector<8x128xf32>
    %100 = vector.multi_reduction <add>, %99, %cst_98 [0] : vector<2x8x128xf32> to vector<8x128xf32>
    %101 = arith.addf %98, %100 : vector<8x128xf32>
    %c0_99 = arith.constant 0 : index
    %c5_100 = arith.constant 5 : index
    %c0_101 = arith.constant 0 : index
    %c0_102 = arith.constant 0 : index
    %102 = vector.load %arg8[%c0_99, %c5_100, %c0_101, %c0_102] : memref<1x6x8x128xf32, #tpu.memory_space<vmem>>, vector<1x1x8x128xf32>
    %103 = vector.shape_cast %102 : vector<1x1x8x128xf32> to vector<8x128xf32>
    %104 = vector.shape_cast %101 : vector<8x128xf32> to vector<1x1x8x128xf32>
    tpu.vector_store %arg8[%c0_99, %c5_100, %c0_101, %c0_102], %104 {strides = array<i32>} : memref<1x6x8x128xf32, #tpu.memory_space<vmem>>, vector<1x1x8x128xf32>,
    return
  }
  func.func @transform_0(%arg0: i32, %arg1: i32, %arg2: i32) -> (i32, i32, i32) {
    %c1_i32 = arith.constant 1 : i32
    %0 = arith.muli %arg0, %c1_i32 : i32
    %1 = arith.addi %0, %arg2 : i32
    %c0_i32 = arith.constant 0 : i32
    %c0_i32_0 = arith.constant 0 : i32
    return %arg1, %1, %c0_i32 : i32, i32, i32
  }
  func.func @transform_1(%arg0: i32, %arg1: i32, %arg2: i32) -> (i32, i32, i32) {
    %c1_i32 = arith.constant 1 : i32
    %0 = arith.muli %arg0, %c1_i32 : i32
    %1 = arith.addi %0, %arg2 : i32
    %c0_i32 = arith.constant 0 : i32
    %c0_i32_0 = arith.constant 0 : i32
    return %arg1, %1, %c0_i32 : i32, i32, i32
  }
  func.func @transform_2(%arg0: i32, %arg1: i32, %arg2: i32) -> (i32, i32, i32) {
    %c1_i32 = arith.constant 1 : i32
    %0 = arith.muli %arg0, %c1_i32 : i32
    %1 = arith.addi %0, %arg2 : i32
    %c0_i32 = arith.constant 0 : i32
    %c0_i32_0 = arith.constant 0 : i32
    return %arg1, %1, %c0_i32 : i32, i32, i32
  }
  func.func @transform_3(%arg0: i32, %arg1: i32, %arg2: i32) -> (i32, i32, i32, i32) {
    %c1_i32 = arith.constant 1 : i32
    %0 = arith.muli %arg0, %c1_i32 : i32
    %1 = arith.addi %0, %arg2 : i32
    %c0_i32 = arith.constant 0 : i32
    %c0_i32_0 = arith.constant 0 : i32
    %c0_i32_1 = arith.constant 0 : i32
    return %arg1, %c0_i32, %1, %c0_i32_0 : i32, i32, i32, i32
  }
  func.func @transform_4(%arg0: i32, %arg1: i32, %arg2: i32) -> (i32, i32, i32, i32) {
    %c1_i32 = arith.constant 1 : i32
    %0 = arith.muli %arg0, %c1_i32 : i32
    %1 = arith.addi %0, %arg2 : i32
    %c0_i32 = arith.constant 0 : i32
    %c0_i32_0 = arith.constant 0 : i32
    %c0_i32_1 = arith.constant 0 : i32
    return %arg1, %c0_i32, %1, %c0_i32_0 : i32, i32, i32, i32
  }
  func.func @transform_5(%arg0: i32, %arg1: i32, %arg2: i32) -> (i32, i32, i32, i32) {
    %c0_i32 = arith.constant 0 : i32
    %c0_i32_0 = arith.constant 0 : i32
    %c0_i32_1 = arith.constant 0 : i32
    %c0_i32_2 = arith.constant 0 : i32
    return %arg0, %c0_i32, %c0_i32_0, %c0_i32_1 : i32, i32, i32, i32
  }
}

</mosaic_0001>

<llo_original>
// kernel: east_loss.1
$region0: #{east_loss.1}
  #allocation0 [shape = 'u32[]', space=smem, size = 0x4, offset = 0x4, fixed_abs, tag = 'smem constant byte address 0x4 - core index']
  #allocation1 [shape = 'u32[144,128]{1,0:T(1,128)}', space=vmem, size = 0x12000, scoped, tag = 'internal scratch']
  %s0 = inlined_call_operand.vmem [shape: f32[2,8,128], index: 0, kind: input, shape index: {}]
  %s1 = inlined_call_operand.vmem [shape: f32[2,8,128], index: 1, kind: input, shape index: {}]
  %s2 = inlined_call_operand.vmem [shape: f32[2,8,128], index: 2, kind: input, shape index: {}]
  %s3 = inlined_call_operand.vmem [shape: f32[2,5,8,128], index: 3, kind: input, shape index: {}]
  %s4 = inlined_call_operand.vmem [shape: f32[2,5,8,128], index: 4, kind: input, shape index: {}]
  %s5 = inlined_call_operand.vmem [shape: f32[1,6,8,128], index: 5, kind: output, shape index: {}]
  %s6 = sld [smem:[#allocation0]]
  $region34: #{east_loss.1} parent=0
    _
  %s8 = ssub.s32 1, %s6
  %s9 = scalar_select 0, %s8, %s6
  // Predicated region
  $region2: #{east_loss.1} parent=0 // pred_check
    _
  $region3: #{east_loss.1} parent=0 // pred_check_branch
    %11 = sbr.rel (0) target = $region5
  $region4: #{east_loss.1} parent=0 // pred_region
    %s12 = sadd.s32 0, 0
    %p13 = scmp.lt.s32.totalorder %s12, 0
    %s14 = scalar_select %p13, %s12, 0
    %s15 = smul.addr %s14, 8
    %s16 = scalar_lea.vmem %s0, %s15
    %s17 = sadd.s32 0, 0
  $region5: #{east_loss.1} parent=0 // pred_fallthru
    _
  // Predicated region
  $region6: #{east_loss.1} parent=0 // pred_check
    _
  $region7: #{east_loss.1} parent=0 // pred_check_branch
    %19 = sbr.rel (0) target = $region9
  $region8: #{east_loss.1} parent=0 // pred_region
    %s20 = sadd.s32 0, 0
    %p21 = scmp.lt.s32.totalorder %s20, 0
    %s22 = scalar_select %p21, %s20, 0
    %s23 = smul.addr %s22, 8
    %s24 = scalar_lea.vmem %s1, %s23
    %s25 = sadd.s32 0, 0
  $region9: #{east_loss.1} parent=0 // pred_fallthru
    _
  // Predicated region
  $region10: #{east_loss.1} parent=0 // pred_check
    _
  $region11: #{east_loss.1} parent=0 // pred_check_branch
    %27 = sbr.rel (0) target = $region13
  $region12: #{east_loss.1} parent=0 // pred_region
    %s28 = sadd.s32 0, 0
    %p29 = scmp.lt.s32.totalorder %s28, 0
    %s30 = scalar_select %p29, %s28, 0
    %s31 = smul.addr %s30, 8
    %s32 = scalar_lea.vmem %s2, %s31
    %s33 = sadd.s32 0, 0
  $region13: #{east_loss.1} parent=0 // pred_fallthru
    _
  // Predicated region
  $region14: #{east_loss.1} parent=0 // pred_check
    _
  $region15: #{east_loss.1} parent=0 // pred_check_branch
    %35 = sbr.rel (0) target = $region17
  $region16: #{east_loss.1} parent=0 // pred_region
    %s36 = sadd.s32 0, 0
    %p37 = scmp.lt.s32.totalorder %s36, 0
    %s38 = scalar_select %p37, %s36, 0
    %s39 = smul.addr %s38, 8
    %s40 = scalar_lea.vmem %s3, %s39
    %s41 = sadd.s32 0, 0
  $region17: #{east_loss.1} parent=0 // pred_fallthru
    _
  // Predicated region
  $region18: #{east_loss.1} parent=0 // pred_check
    _
  $region19: #{east_loss.1} parent=0 // pred_check_branch
    %43 = sbr.rel (0) target = $region21
  $region20: #{east_loss.1} parent=0 // pred_region
    %s44 = sadd.s32 0, 0
    %p45 = scmp.lt.s32.totalorder %s44, 0
    %s46 = scalar_select %p45, %s44, 0
    %s47 = smul.addr %s46, 8
    %s48 = scalar_lea.vmem %s4, %s47
    %s49 = sadd.s32 0, 0
  $region21: #{east_loss.1} parent=0 // pred_fallthru
    _
  %s50 = sadd.s32 0, 0
  %p51 = scmp.lt.s32.totalorder %s50, 0
  %s52 = scalar_select %p51, %s50, 0
  %s53 = smul.addr %s52, 8
  %s54 = scalar_lea.vmem %s0, %s53
  %s55 = sadd.s32 0, 0
  %p56 = scmp.lt.s32.totalorder %s55, 0
  %s57 = scalar_select %p56, %s55, 0
  %s58 = smul.addr %s57, 8
  %s59 = scalar_lea.vmem %s1, %s58
  %s60 = sadd.s32 0, 0
  %p61 = scmp.lt.s32.totalorder %s60, 0
  %s62 = scalar_select %p61, %s60, 0
  %s63 = smul.addr %s62, 8
  %s64 = scalar_lea.vmem %s2, %s63
  %s65 = sadd.s32 0, 0
  %p66 = scmp.lt.s32.totalorder %s65, 0
  %s67 = scalar_select %p66, %s65, 0
  %s68 = smul.addr %s67, 8
  %s69 = scalar_lea.vmem %s3, %s68
  %s70 = sadd.s32 0, 0
  %p71 = scmp.lt.s32.totalorder %s70, 0
  %s72 = scalar_select %p71, %s70, 0
  %s73 = smul.addr %s72, 8
  %s74 = scalar_lea.vmem %s4, %s73
  %s75 = sadd.s32 0, 0
  %p76 = scmp.lt.s32.totalorder %s75, 0
  %s77 = scalar_select %p76, %s75, 0
  %s78 = smul.addr %s77, 8
  %s79 = scalar_lea.vmem %s0, %s78
  %s80 = sadd.s32 0, 0
  %s81 = sadd.s32 0, 0
  %p82 = scmp.lt.s32.totalorder %s81, 0
  %s83 = scalar_select %p82, %s81, 0
  %s84 = smul.addr %s83, 8
  %s85 = scalar_lea.vmem %s1, %s84
  %s86 = sadd.s32 0, 0
  %s87 = sadd.s32 0, 0
  %p88 = scmp.lt.s32.totalorder %s87, 0
  %s89 = scalar_select %p88, %s87, 0
  %s90 = smul.addr %s89, 8
  %s91 = scalar_lea.vmem %s2, %s90
  %s92 = sadd.s32 0, 0
  %s93 = sadd.s32 0, 0
  %p94 = scmp.lt.s32.totalorder %s93, 0
  %s95 = scalar_select %p94, %s93, 0
  %s96 = smul.addr %s95, 8
  %s97 = scalar_lea.vmem %s3, %s96
  %s98 = sadd.s32 0, 0
  %s99 = sadd.s32 0, 0
  %p100 = scmp.lt.s32.totalorder %s99, 0
  %s101 = scalar_select %p100, %s99, 0
  %s102 = smul.addr %s101, 8
  %s103 = scalar_lea.vmem %s4, %s102
  %s104 = sadd.s32 0, 0
  %p105 = scmp.eq.s32.totalorder 0, 0
  %p106 = scmp.eq.s32.totalorder 0, 0
  %p107 = pnand %p105, %p106
  %p108 = pneg %p107
  // Predicated region
  $region22: #{east_loss.1} parent=0 // pred_check
    _
  $region23: #{east_loss.1} parent=0 // pred_check_branch
    %110 = sbr.rel (%p107) target = $region25
  $region24: #{east_loss.1} parent=0 // pred_region
    %111 = vst [vmem:[%s5] sm:$0xff] 0.0
    %112 = vst [vmem:[%s5 + $0x8] sm:$0xff] 0.0
    %113 = vst [vmem:[%s5 + $0x10] sm:$0xff] 0.0
    %114 = vst [vmem:[%s5 + $0x18] sm:$0xff] 0.0
    %115 = vst [vmem:[%s5 + $0x20] sm:$0xff] 0.0
    %116 = vst [vmem:[%s5 + $0x28] sm:$0xff] 0.0
  $region25: #{east_loss.1} parent=0 // pred_fallthru
    _
  %v117 = vld [vmem:[%s79] sm:$0xff]
  %v118 = vld [vmem:[%s79 + $0x8] sm:$0xff]
  %v119 = vld [vmem:[%s85] sm:$0xff]
  %v120 = vld [vmem:[%s85 + $0x8] sm:$0xff]
  %v121 = vld [vmem:[%s91] sm:$0xff]
  %v122 = vld [vmem:[%s91 + $0x8] sm:$0xff]
  %v123 = vsub.f32 1.0, %v121
  %v124 = vsub.f32 1.0, %v122
  %v125 = vmul.f32 %v119, %v123
  %v126 = vmul.f32 %v120, %v124
  %v127 = vld [vmem:[%s97] sm:$0xff]
  %v128 = vld [vmem:[%s97 + $0x28] sm:$0xff]
  %s129 = scalar_lea.vmem %s97, 8
  %v130 = vld [vmem:[%s129] sm:$0xff]
  %v131 = vld [vmem:[%s129 + $0x28] sm:$0xff]
  %s132 = scalar_lea.vmem %s97, 16
  %v133 = vld [vmem:[%s132] sm:$0xff]
  %v134 = vld [vmem:[%s132 + $0x28] sm:$0xff]
  %s135 = scalar_lea.vmem %s97, 24
  %v136 = vld [vmem:[%s135] sm:$0xff]
  %v137 = vld [vmem:[%s135 + $0x28] sm:$0xff]
  %s138 = scalar_lea.vmem %s97, 32
  %v139 = vld [vmem:[%s138] sm:$0xff]
  %v140 = vld [vmem:[%s138 + $0x28] sm:$0xff]
  %v141 = vld [vmem:[%s103] sm:$0xff]
  %v142 = vld [vmem:[%s103 + $0x28] sm:$0xff]
  %s143 = scalar_lea.vmem %s103, 8
  %v144 = vld [vmem:[%s143] sm:$0xff]
  %v145 = vld [vmem:[%s143 + $0x28] sm:$0xff]
  %s146 = scalar_lea.vmem %s103, 16
  %v147 = vld [vmem:[%s146] sm:$0xff]
  %v148 = vld [vmem:[%s146 + $0x28] sm:$0xff]
  %s149 = scalar_lea.vmem %s103, 24
  %v150 = vld [vmem:[%s149] sm:$0xff]
  %v151 = vld [vmem:[%s149 + $0x28] sm:$0xff]
  %s152 = scalar_lea.vmem %s103, 32
  %v153 = vld [vmem:[%s152] sm:$0xff]
  %v154 = vld [vmem:[%s152 + $0x28] sm:$0xff]
  %v155 = vadd.f32 %v127, %v130
  %v156 = vadd.f32 %v128, %v131
  %v157 = vadd.f32 %v133, %v136
  %v158 = vadd.f32 %v134, %v137
  %v159 = vmul.f32 %v155, %v157
  %v160 = vmul.f32 %v156, %v158
  %v161 = vadd.f32 %v141, %v144
  %v162 = vadd.f32 %v142, %v145
  %v163 = vadd.f32 %v147, %v150
  %v164 = vadd.f32 %v148, %v151
  %v165 = vmul.f32 %v161, %v163
  %v166 = vmul.f32 %v162, %v164
  %v167 = vmin.f32 %v133, %v147
  %v168 = vmin.f32 %v134, %v148
  %v169 = vmin.f32 %v136, %v150
  %v170 = vmin.f32 %v137, %v151
  %v171 = vadd.f32 %v167, %v169
  %v172 = vadd.f32 %v168, %v170
  %v173 = vmin.f32 %v127, %v141
  %v174 = vmin.f32 %v128, %v142
  %v175 = vmin.f32 %v130, %v144
  %v176 = vmin.f32 %v131, %v145
  %v177 = vadd.f32 %v173, %v175
  %v178 = vadd.f32 %v174, %v176
  %v179 = vmul.f32 %v171, %v177
  %v180 = vmul.f32 %v172, %v178
  %v181 = vadd.f32 %v159, %v165
  %v182 = vadd.f32 %v160, %v166
  %v183 = vsub.f32 %v181, %v179
  %v184 = vsub.f32 %v182, %v180
  %v185 = vadd.f32 %v179, 1.0
  %v186 = vadd.f32 %v180, 1.0
  %v187 = vadd.f32 %v183, 1.0
  %v188 = vadd.f32 %v184, 1.0
  %v189 = vrcp.pop %v187
  %v190 = vmul.f32 %v185, %v189
  %v191 = vrcp.pop %v188
  %v192 = vmul.f32 %v186, %v191
  %v193 = vlog2.pop %v190
  %v194 = vmul.f32 %v193, 0.6931472
  %v195 = vlog2.pop %v192
  %v196 = vmul.f32 %v195, 0.6931472
  %v197 = vsub.f32 0.0, %v194
  %v198 = vsub.f32 0.0, %v196
  %v199 = vsub.f32 %v153, %v139
  %v200 = vsub.f32 %v154, %v140
  %v201 = vand.u32 2147483647, %v199
  %vm202 = vcmp.le.f32.partialorder %v201, 0.7853982
  %vm203 = vcmp.lt.s32.totalorder %v199, 0
  %v204 = vand.u32 %v199, 2139095040
  %v205 = vshrl.u32 %v204, 23
  %v206 = vsub.s32 %v205, 127
  %v207 = vand.u32 2147483647, %v199
  %v208 = vand.u32 %v207, 8388607
  %v209 = vor.u32 %v208, 8388608
  %v210 = vsub.s32 0, %v209
  %v211 = vadd.s32 %v206, 1
  %vm212 = vcmp.gt.s32.totalorder %v211, 0
  %v213 = vsel %vm212, %v211, 0
  %v214 = vshrl.u32 %v213, 5
  %v215 = vand.u32 %v213, 31
  %v216 = vsub.s32 32, %v215
  %v217 = vshrl.u32 683565275, %v216
  %v218 = vshll.u32 683565275, %v215
  %v219 = vshrl.u32 2475754826, %v216
  %v220 = vor.u32 %v218, %v219
  %v221 = vshll.u32 2475754826, %v215
  %v222 = vshrl.u32 2131351028, %v216
  %v223 = vor.u32 %v221, %v222
  %v224 = vshll.u32 2131351028, %v215
  %v225 = vshrl.u32 2102212464, %v216
  %v226 = vor.u32 %v224, %v225
  %v227 = vshll.u32 2102212464, %v215
  %v228 = vshrl.u32 920167782, %v216
  %v229 = vor.u32 %v227, %v228
  %v230 = vshll.u32 920167782, %v215
  %v231 = vshrl.u32 1326507024, %v216
  %v232 = vor.u32 %v230, %v231
  %vm233 = vcmp.lt.s32.totalorder %v214, 1
  %vm234 = vcmp.lt.s32.totalorder %v214, 2
  %vm235 = vcmp.lt.s32.totalorder %v214, 3
  %vm236 = vcmp.lt.s32.totalorder %v214, 4
  %v237 = vsel %vm233, %v217, %v220
  %v238 = vsel %vm236, %v226, 2102212464
  %v239 = vsel %vm235, %v223, %v238
  %v240 = vsel %vm234, %v237, %v239
  %v241 = vsel %vm233, %v220, %v223
  %v242 = vsel %vm236, %v229, 920167782
  %v243 = vsel %vm235, %v226, %v242
  %v244 = vsel %vm234, %v241, %v243
  %v245 = vsel %vm233, %v223, %v226
  %v246 = vsel %vm236, %v232, 1326507024
  %v247 = vsel %vm235, %v229, %v246
  %v248 = vsel %vm234, %v245, %v247
  %v249 = vshll.u32 %v209, 8
  %v250 = vmul.u32.u64.compose %v249, %v248
  %v251 = vextract.low.u32 %v250
  %v252 = vextract.high.u32 %v250
  %v253 = vmul.u32.u64.compose %v249, %v244
  %v254 = vextract.low.u32 %v253
  %v255 = vextract.high.u32 %v253
  %v256 = vmul.u32 %v249, %v240
  %v257 = vadd.s32 %v252, %v254
  %vm258 = vc.u32 %v252, %v254
  %v259 = vadd.s32 %v255, 1
  %v260 = vsel %vm258, %v259, %v255
  %v261 = vadd.s32 %v256, %v260
  %v262 = vadd.s32 %v261, 536870912
  %v263 = vshrl.u32 %v262, 30
  %v264 = vshll.u32 %v263, 30
  %v265 = vsub.s32 %v261, %v264
  %vm266 = vcmp.lt.s32.totalorder %v265, 0
  %v267 = vsub.s32 0, %v265
  %v268 = vsel %vm266, %v267, %v265
  %v269 = vclz %v268
  %v270 = vsub.s32 %v269, 2
  %vm271 = vcmp.gt.s32.totalorder 0, %v270
  %v272 = vsel %vm271, 0, %v270
  %v273 = vsub.s32 32, %v272
  %v274 = vshll.u32 %v265, %v272
  %v275 = vshrl.u32 %v257, %v273
  %v276 = vor.u32 %v274, %v275
  %v277 = vsub.s32 4294967266, %v272
  %v278 = vadd.s32 %v277, 127
  %v279 = vshll.u32 %v278, 23
  %v280 = vor.u32 4788187, %v279
  %v281 = vand.u32 2147483647, %v280
  %v283 = vcvt.s32.f32 %v276
  %v284 = vmul.f32 %v283, %v281
  %v285 = vxor.u32 %v284, 2147483648
  %v286 = vsel %vm203, %v285, %v284
  %v287 = vsub.s32 4, %v263
  %v288 = vsel %vm203, %v287, %v263
  %v289 = vsel %vm202, %v199, %v286
  %v290 = vsel %vm202, 0, %v288
  %v291 = vcosq.f32.pop %v289
  %v292 = vsinq.f32.pop %v289
  %vm293 = vweird.f32 %v199
  %v294 = vand.u32 %v290, 3
  %vm295 = vcmp.lt.s32.totalorder %v294, 2
  %vm296 = vcmp.eq.s32.totalorder %v294, 0
  %v297 = vxor.u32 %v292, 2147483648
  %v298 = vsel %vm296, %v291, %v297
  %vm299 = vcmp.eq.s32.totalorder %v294, 2
  %v300 = vxor.u32 %v291, 2147483648
  %v301 = vsel %vm299, %v300, %v292
  %v302 = vsel %vm295, %v298, %v301
  %v303 = vsel %vm293, nan, %v302
  %v304 = vand.u32 2147483647, %v200
  %vm305 = vcmp.le.f32.partialorder %v304, 0.7853982
  %vm306 = vcmp.lt.s32.totalorder %v200, 0
  %v307 = vand.u32 %v200, 2139095040
  %v308 = vshrl.u32 %v307, 23
  %v309 = vsub.s32 %v308, 127
  %v310 = vand.u32 2147483647, %v200
  %v311 = vand.u32 %v310, 8388607
  %v312 = vor.u32 %v311, 8388608
  %v313 = vsub.s32 0, %v312
  %v314 = vadd.s32 %v309, 1
  %vm315 = vcmp.gt.s32.totalorder %v314, 0
  %v316 = vsel %vm315, %v314, 0
  %v317 = vshrl.u32 %v316, 5
  %v318 = vand.u32 %v316, 31
  %v319 = vsub.s32 32, %v318
  %v320 = vshrl.u32 683565275, %v319
  %v321 = vshll.u32 683565275, %v318
  %v322 = vshrl.u32 2475754826, %v319
  %v323 = vor.u32 %v321, %v322
  %v324 = vshll.u32 2475754826, %v318
  %v325 = vshrl.u32 2131351028, %v319
  %v326 = vor.u32 %v324, %v325
  %v327 = vshll.u32 2131351028, %v318
  %v328 = vshrl.u32 2102212464, %v319
  %v329 = vor.u32 %v327, %v328
  %v330 = vshll.u32 2102212464, %v318
  %v331 = vshrl.u32 920167782, %v319
  %v332 = vor.u32 %v330, %v331
  %v333 = vshll.u32 920167782, %v318
  %v334 = vshrl.u32 1326507024, %v319
  %v335 = vor.u32 %v333, %v334
  %vm336 = vcmp.lt.s32.totalorder %v317, 1
  %vm337 = vcmp.lt.s32.totalorder %v317, 2
  %vm338 = vcmp.lt.s32.totalorder %v317, 3
  %vm339 = vcmp.lt.s32.totalorder %v317, 4
  %v340 = vsel %vm336, %v320, %v323
  %v341 = vsel %vm339, %v329, 2102212464
  %v342 = vsel %vm338, %v326, %v341
  %v343 = vsel %vm337, %v340, %v342
  %v344 = vsel %vm336, %v323, %v326
  %v345 = vsel %vm339, %v332, 920167782
  %v346 = vsel %vm338, %v329, %v345
  %v347 = vsel %vm337, %v344, %v346
  %v348 = vsel %vm336, %v326, %v329
  %v349 = vsel %vm339, %v335, 1326507024
  %v350 = vsel %vm338, %v332, %v349
  %v351 = vsel %vm337, %v348, %v350
  %v352 = vshll.u32 %v312, 8
  %v353 = vmul.u32.u64.compose %v352, %v351
  %v354 = vextract.low.u32 %v353
  %v355 = vextract.high.u32 %v353
  %v356 = vmul.u32.u64.compose %v352, %v347
  %v357 = vextract.low.u32 %v356
  %v358 = vextract.high.u32 %v356
  %v359 = vmul.u32 %v352, %v343
  %v360 = vadd.s32 %v355, %v357
  %vm361 = vc.u32 %v355, %v357
  %v362 = vadd.s32 %v358, 1
  %v363 = vsel %vm361, %v362, %v358
  %v364 = vadd.s32 %v359, %v363
  %v365 = vadd.s32 %v364, 536870912
  %v366 = vshrl.u32 %v365, 30
  %v367 = vshll.u32 %v366, 30
  %v368 = vsub.s32 %v364, %v367
  %vm369 = vcmp.lt.s32.totalorder %v368, 0
  %v370 = vsub.s32 0, %v368
  %v371 = vsel %vm369, %v370, %v368
  %v372 = vclz %v371
  %v373 = vsub.s32 %v372, 2
  %vm374 = vcmp.gt.s32.totalorder 0, %v373
  %v375 = vsel %vm374, 0, %v373
  %v376 = vsub.s32 32, %v375
  %v377 = vshll.u32 %v368, %v375
  %v378 = vshrl.u32 %v360, %v376
  %v379 = vor.u32 %v377, %v378
  %v380 = vsub.s32 4294967266, %v375
  %v381 = vadd.s32 %v380, 127
  %v382 = vshll.u32 %v381, 23
  %v383 = vor.u32 4788187, %v382
  %v384 = vand.u32 2147483647, %v383
  %v386 = vcvt.s32.f32 %v379
  %v387 = vmul.f32 %v386, %v384
  %v388 = vxor.u32 %v387, 2147483648
  %v389 = vsel %vm306, %v388, %v387
  %v390 = vsub.s32 4, %v366
  %v391 = vsel %vm306, %v390, %v366
  %v392 = vsel %vm305, %v200, %v389
  %v393 = vsel %vm305, 0, %v391
  %v394 = vcosq.f32.pop %v392
  %v395 = vsinq.f32.pop %v392
  %vm396 = vweird.f32 %v200
  %v397 = vand.u32 %v393, 3
  %vm398 = vcmp.lt.s32.totalorder %v397, 2
  %vm399 = vcmp.eq.s32.totalorder %v397, 0
  %v400 = vxor.u32 %v395, 2147483648
  %v401 = vsel %vm399, %v394, %v400
  %vm402 = vcmp.eq.s32.totalorder %v397, 2
  %v403 = vxor.u32 %v394, 2147483648
  %v404 = vsel %vm402, %v403, %v395
  %v405 = vsel %vm398, %v401, %v404
  %v406 = vsel %vm396, nan, %v405
  %v407 = vsub.f32 1.0, %v303
  %v408 = vsub.f32 1.0, %v406
  %v409 = vld [vmem:[%s5] sm:$0xff]
  %v410 = vadd.f32 %v117, %v118
  %v411 = vadd.f32 %v409, %v410
  %412 = vst [vmem:[%s5] sm:$0xff] %v411
  %s413 = scalar_lea.vmem %s5, 8
  %v414 = vld [vmem:[%s413] sm:$0xff]
  %v415 = vmul.f32 %v117, %v125
  %v416 = vmul.f32 %v118, %v126
  %v417 = vadd.f32 %v415, %v416
  %v418 = vadd.f32 %v414, %v417
  %419 = vst [vmem:[%s413] sm:$0xff] %v418
  %s420 = scalar_lea.vmem %s5, 16
  %v421 = vld [vmem:[%s420] sm:$0xff]
  %v422 = vmul.f32 %v117, %v117
  %v423 = vmul.f32 %v118, %v118
  %v424 = vadd.f32 %v422, %v423
  %v425 = vadd.f32 %v421, %v424
  %426 = vst [vmem:[%s420] sm:$0xff] %v425
  %s427 = scalar_lea.vmem %s5, 24
  %v428 = vld [vmem:[%s427] sm:$0xff]
  %v429 = vmul.f32 %v125, %v125
  %v430 = vmul.f32 %v126, %v126
  %v431 = vadd.f32 %v429, %v430
  %v432 = vadd.f32 %v428, %v431
  %433 = vst [vmem:[%s427] sm:$0xff] %v432
  %s434 = scalar_lea.vmem %s5, 32
  %v435 = vld [vmem:[%s434] sm:$0xff]
  %v436 = vmul.f32 %v407, %v117
  %v437 = vmul.f32 %v408, %v118
  %v438 = vadd.f32 %v436, %v437
  %v439 = vadd.f32 %v435, %v438
  %440 = vst [vmem:[%s434] sm:$0xff] %v439
  %s441 = scalar_lea.vmem %s5, 40
  %v442 = vld [vmem:[%s441] sm:$0xff]
  %v443 = vmul.f32 %v197, %v117
  %v444 = vmul.f32 %v198, %v118
  %v445 = vadd.f32 %v443, %v444
  %v446 = vadd.f32 %v442, %v445
  %447 = vst [vmem:[%s441] sm:$0xff] %v446
  // Predicated region
  $region26: #{east_loss.1} parent=0 // pred_check
    _
  $region27: #{east_loss.1} parent=0 // pred_check_branch
    %449 = sbr.rel (0) target = $region29
  $region28: #{east_loss.1} parent=0 // pred_region
    _
  $region29: #{east_loss.1} parent=0 // pred_fallthru
    _
  // Predicated region
  $region30: #{east_loss.1} parent=0 // pred_check
    _
  $region31: #{east_loss.1} parent=0 // pred_check_branch
    %451 = sbr.rel (0) target = $region33
  $region32: #{east_loss.1} parent=0 // pred_region
    _
  $region33: #{east_loss.1} parent=0 // pred_fallthru
    _

</llo_original>
